<compile_context>
chip_gen: v5e
topology: v5e:2x2
jax: 0.10.0
libtpu: 0.0.40
codegen_flags: <defaults>
</compile_context>

<pallas_src>
import functools

import numpy as np
import jax
import jax.numpy as jnp
from jax.experimental import pallas as pl
from jax.experimental.pallas import tpu as pltpu

jax.config.update("jax_default_matmul_precision", "highest")

_LANE = 128
_SUBLANE = 8


# ---------------------------------------------------------------------------
# Host-side constant construction (deterministic numpy glue)
# ---------------------------------------------------------------------------
def _blackman_window(window_size: int) -> np.ndarray:
    # torch.blackman_window default (periodic=True):
    #   w[n] = 0.42 - 0.5*cos(2*pi*n/N) + 0.08*cos(4*pi*n/N), n = 0..N-1
    n = np.arange(window_size, dtype=np.float64)
    w = (0.42
         - 0.5 * np.cos(2.0 * np.pi * n / window_size)
         + 0.08 * np.cos(4.0 * np.pi * n / window_size))
    return w.astype(np.float32)


def _dft_matrices(T: int):
    # Real-input DFT (rfft) along time and its inverse (irfft) as real matmuls (float64).
    freq = T // 2 + 1
    t = np.arange(T, dtype=np.float64)
    f = np.arange(freq, dtype=np.float64)
    ang = 2.0 * np.pi * np.outer(f, t) / T                      # (freq, T)
    Cr = np.cos(ang)                                            # Re(exp(-i ang))
    Ci = -np.sin(ang)                                           # Im(exp(-i ang))
    w = np.full(freq, 2.0)
    w[0] = 1.0
    if T % 2 == 0:
        w[-1] = 1.0
    IDr = (w[None, :] * np.cos(ang.T)) / T                      # (T, freq)
    IDi = (-w[None, :] * np.sin(ang.T)) / T                     # (T, freq)
    return Cr, Ci, IDr, IDi


def _smoothing_matrix(T: int, window: np.ndarray) -> np.ndarray:
    # Folds flipped left/right padding + sliding Blackman window + normalization
    # into one (T, T) matrix S so that smoothed = S @ x (float64).
    W = window.shape[0]
    h = W // 2
    denom = float(window.sum())

    def src(j):
        if j < h:                       # left_padding = x[:, :h, :].flip(1)
            return h - 1 - j
        elif j < h + T:                 # original signal
            return j - h
        else:                           # right_padding = x[:, -h:, :].flip(1)
            return 2 * T - 1 - (j - h)

    S = np.zeros((T, T), dtype=np.float64)
    for i in range(T):
        for m in range(W):
            S[i, src(i + m)] += float(window[m]) / denom
    return S


def _build_constants(T: int, window_size: int):
    # Stacked forward-DFT constant CrCi = [Cr; Ci]  -> one matmul for the whole spectrum.
    # Stacked (smoothing @ inverse-DFT) SID = [S@IDr | S@IDi] -> one matmul for the output.
    freq = T // 2 + 1
    freq_pad = ((freq + _SUBLANE - 1) // _SUBLANE) * _SUBLANE
    window = _blackman_window(window_size).astype(np.float64)
    Cr, Ci, IDr, IDi = _dft_matrices(T)
    S = _smoothing_matrix(T, window)
    SIDr = S @ IDr                                               # (T, freq)
    SIDi = S @ IDi                                               # (T, freq)

    CrCi = np.zeros((2 * freq_pad, T), np.float32)
    CrCi[:freq] = Cr
    CrCi[freq_pad:freq_pad + freq] = Ci
    SID = np.zeros((T, 2 * freq_pad), np.float32)
    SID[:, :freq] = SIDr
    SID[:, freq_pad:freq_pad + freq] = SIDi
    return CrCi, SID, freq, freq_pad


# ---------------------------------------------------------------------------
# Pallas kernel: one lane-dense column tile of shape (T, tile_n) per grid step
# ---------------------------------------------------------------------------
def _sft_kernel(x_ref, crci_ref, sid_ref, o_ref, *, k: int, freq_pad: int):
    hi = jax.lax.Precision.HIGHEST
    x = x_ref[...]                                               # (T, tile_n)

    # Forward rfft (real+imag stacked) in a single MXU matmul: (2*freq_pad, tile_n)
    spec = jnp.dot(crci_ref[...], x, preferred_element_type=jnp.float32, precision=hi)
    xr = spec[:freq_pad]
    xi = spec[freq_pad:]

    # Top-k spectral filter on squared magnitudes (same ordering as abs, no sqrt).
    # Padded rows have exactly-zero spectrum (zero constant rows) and zero inverse-DFT
    # columns, so no explicit padded-row mask is needed.
    mag2 = xr * xr + xi * xi
    neg_inf = jnp.float32(-jnp.inf)
    cur = mag2
    for _ in range(k - 1):                                       # k is small & static
        m = jnp.max(cur, axis=0, keepdims=True)
        cur = jnp.where(cur >= m, neg_inf, cur)
    thresh = jnp.max(cur, axis=0, keepdims=True)                 # k-th largest value
    # TODO(synk): ties keep every frequency at the threshold (can exceed k bins), which
    #             differs from torch.topk's index-ordered tie-breaking; edge case only.
    keep = (mag2 >= thresh).astype(jnp.float32)                  # (freq_pad, tile_n)
    spec_f = spec * jnp.concatenate([keep, keep], axis=0)

    # irfft + Blackman smoothing fused into one MXU matmul: (T, tile_n)
    o_ref[...] = jnp.dot(sid_ref[...], spec_f,
                         preferred_element_type=jnp.float32, precision=hi)


# ---------------------------------------------------------------------------
# Host-side tiling / budgeting helpers
# ---------------------------------------------------------------------------
def _choose_tile(n_cols: int) -> int:
    # Lane-dense column tile.  Wider tiles amortize per-grid-step overhead (~0.35us) but
    # keep >= 2 grid steps when the column count allows (v7x has 2 TensorCores).
    if n_cols <= 4 * _LANE:
        return _LANE
    if n_cols <= 16 * _LANE:
        return 2 * _LANE
    return 4 * _LANE


def _vmem_limit(T: int, freq_pad: int, tile_n: int) -> int:
    const_bytes = 4 * 2 * (2 * freq_pad) * T            # CrCi + SID (one copy)
    io_bytes = 4 * 2 * T * tile_n                        # x tile + out tile (one copy)
    interm_bytes = 4 * (2 * freq_pad) * tile_n * 5       # spec/mag2/cur/keep/spec_f
    est = 2 * const_bytes + 2 * io_bytes + interm_bytes  # x2: default double buffering
    return int(min(max(est * 3 // 2, 16 * 1024 * 1024), 48 * 1024 * 1024))


# ---------------------------------------------------------------------------
# Wrapper
# ---------------------------------------------------------------------------
def spectral_filter_transform(x, window_size: int, k: int):
    x = jnp.asarray(x, jnp.float32)
    B, T, F = x.shape
    assert T % 2 == 0, "time dimension must be even for the rfft/irfft round-trip"

    CrCi_np, SID_np, freq, freq_pad = _build_constants(T, window_size)
    k_eff = int(max(1, min(int(k), freq)))
    kernel = functools.partial(_sft_kernel, k=k_eff, freq_pad=freq_pad)
    crci = jnp.asarray(CrCi_np)
    sid = jnp.asarray(SID_np)

    if F % _LANE == 0:
        # Native layout: no host-side transpose/reshape HBM round-trips.
        tile_f = _choose_tile(F)
        while F % tile_f != 0:
            tile_f //= 2
        n_tiles = F // tile_f
        flops = 4 * (2 * freq_pad) * T * B * F
        bytes_accessed = 4 * (2 * B * T * F + 2 * (2 * freq_pad) * T)
        return pl.pallas_call(
            kernel,
            out_shape=jax.ShapeDtypeStruct((B, T, F), jnp.float32),
            grid=(B, n_tiles),
            in_specs=[
                pl.BlockSpec((None, T, tile_f), lambda b, j: (b, 0, j)),   # x tile
                pl.BlockSpec((2 * freq_pad, T), lambda b, j: (0, 0)),      # CrCi
                pl.BlockSpec((T, 2 * freq_pad), lambda b, j: (0, 0)),      # S @ [IDr|IDi]
            ],
            out_specs=pl.BlockSpec((None, T, tile_f), lambda b, j: (b, 0, j)),
            compiler_params=pltpu.CompilerParams(
                dimension_semantics=("parallel", "parallel"),
                vmem_limit_bytes=_vmem_limit(T, freq_pad, tile_f)),
            cost_estimate=pl.CostEstimate(flops=flops, transcendentals=0,
                                          bytes_accessed=bytes_accessed),
        )(x, crci, sid)

    # Fallback for lane-misaligned F: flatten batch*feature into the lane axis.
    N = B * F
    tile_n = _choose_tile(N)
    n_tiles = -(-N // tile_n)
    N_pad = n_tiles * tile_n
    x2 = jnp.transpose(x, (1, 0, 2)).reshape(T, N)
    if N_pad != N:
        x2 = jnp.pad(x2, ((0, 0), (0, N_pad - N)))

    flops = 4 * (2 * freq_pad) * T * N_pad
    bytes_accessed = 4 * (2 * T * N_pad + 2 * (2 * freq_pad) * T)
    out = pl.pallas_call(
        kernel,
        out_shape=jax.ShapeDtypeStruct((T, N_pad), jnp.float32),
        grid=(n_tiles,),
        in_specs=[
            pl.BlockSpec((T, tile_n), lambda j: (0, j)),                   # x column tile
            pl.BlockSpec((2 * freq_pad, T), lambda j: (0, 0)),             # CrCi
            pl.BlockSpec((T, 2 * freq_pad), lambda j: (0, 0)),             # S @ [IDr|IDi]
        ],
        out_specs=pl.BlockSpec((T, tile_n), lambda j: (0, j)),
        compiler_params=pltpu.CompilerParams(
            dimension_semantics=("parallel",),
            vmem_limit_bytes=_vmem_limit(T, freq_pad, tile_n)),
        cost_estimate=pl.CostEstimate(flops=flops, transcendentals=0,
                                      bytes_accessed=bytes_accessed),
    )(x2, crci, sid)

    out = out[:, :N].reshape(T, B, F)
    return jnp.transpose(out, (1, 0, 2))


# ---------------------------------------------------------------------------
# Pure-JAX reference (mirrors the PyTorch module) for a correctness check
# ---------------------------------------------------------------------------
def _reference(x, window_size: int, k: int):
    x = jnp.asarray(x, jnp.float32)
    B, T, F = x.shape
    Xf = jnp.fft.rfft(x, axis=1)                                # (B, freq, F)
    mag = jnp.abs(Xf)
    magT = jnp.moveaxis(mag, 1, 2)                              # (B, F, freq)
    _, idx = jax.lax.top_k(magT, k)                             # (B, F, k)
    keep = jnp.zeros(magT.shape, dtype=bool)
    bidx = jnp.arange(B)[:, None, None]
    fidx = jnp.arange(F)[None, :, None]
    keep = keep.at[bidx, fidx, idx].set(True)
    keep = jnp.moveaxis(keep, 2, 1)                             # (B, freq, F)
    Xf_f = jnp.where(keep, Xf, jnp.zeros_like(Xf))
    xrec = jnp.fft.irfft(Xf_f, n=T, axis=1)                     # (B, T, F)
    w = jnp.asarray(_blackman_window(window_size), jnp.float32)
    h = window_size // 2
    left = xrec[:, :h, :][:, ::-1, :]
    right = xrec[:, T - h:, :][:, ::-1, :]
    padded = jnp.concatenate([left, xrec, right], axis=1)
    rows = []
    for i in range(T):
        win = padded[:, i:i + window_size, :]
        rows.append(jnp.sum(win * w[None, :, None], axis=1) / jnp.sum(w))
    return jnp.stack(rows, axis=1)


# ---------------------------------------------------------------------------
if __name__ == "__main__":
    # Module hyper-params (deterministic, in-script): window_size=5, k=3
    WINDOW_SIZE = 5
    K = 3

    key = jax.random.PRNGKey(0)
    B, T, F = 2, 16, 8                         # (batch, time, feature)
    x = jax.random.normal(key, (B, T, F), dtype=jnp.float32)

    out = spectral_filter_transform(x, WINDOW_SIZE, K)
    out = jax.block_until_ready(out)

    assert out.shape == (B, T, F), out.shape
    assert bool(jnp.all(jnp.isfinite(out)))

    ref = jax.block_until_ready(_reference(x, WINDOW_SIZE, K))
    np.testing.assert_allclose(np.asarray(out), np.asarray(ref), rtol=5e-3, atol=5e-3)

    print("KERNEL_OK")
</pallas_src>

<mosaic_0001>
module attributes {stable_mosaic.version = 11 : i64} {
  func.func @_sft_kernel(%arg0: i32, %arg1: memref<16x128xf32, #tpu.memory_space<vmem>>, %arg2: memref<32x16xf32, #tpu.memory_space<vmem>>, %arg3: memref<16x32xf32, #tpu.memory_space<vmem>>, %arg4: memref<16x128xf32, #tpu.memory_space<vmem>>) attributes {dimension_semantics = [#tpu.dimension_semantics<parallel>], iteration_bounds = array<i64: 1>, scalar_prefetch = 0 : i64, scratch_operands = 0 : i64, tpu.core_type = #tpu.core_type<tc>, window_params = [{transform_indices = @transform_0, window_bounds = array<i64: 16, 128>}, {pipeline_mode = #tpu.pipeline_mode<synchronous>, transform_indices = @transform_1, window_bounds = array<i64: 32, 16>}, {pipeline_mode = #tpu.pipeline_mode<synchronous>, transform_indices = @transform_2, window_bounds = array<i64: 16, 32>}, {transform_indices = @transform_3, window_bounds = array<i64: 16, 128>}]} {
    %c0 = arith.constant 0 : index
    %c0_0 = arith.constant 0 : index
    %0 = vector.load %arg1[%c0, %c0_0] : memref<16x128xf32, #tpu.memory_space<vmem>>, vector<16x128xf32>
    %c0_1 = arith.constant 0 : index
    %c0_2 = arith.constant 0 : index
    %1 = vector.load %arg2[%c0_1, %c0_2] : memref<32x16xf32, #tpu.memory_space<vmem>>, vector<32x16xf32>
    %cst = arith.constant dense<0.000000e+00> : vector<32x128xf32>
    %2 = tpu.matmul %1, %0, %cst {dimension_numbers = #tpu.dot_dimension_numbers<[1], [0], [0], [1], [0, 0, 1, 1], [], []>, precision = #tpu.contract_precision<fp32>} : vector<32x16xf32>, vector<16x128xf32>, vector<32x128xf32> -> vector<32x128xf32>
    %3 = vector.extract_strided_slice %2 {offsets = [0, 0], sizes = [16, 128], strides = [1, 1]} : vector<32x128xf32> to vector<16x128xf32>
    %4 = vector.extract_strided_slice %2 {offsets = [16, 0], sizes = [16, 128], strides = [1, 1]} : vector<32x128xf32> to vector<16x128xf32>
    %5 = arith.mulf %3, %3 : vector<16x128xf32>
    %6 = arith.mulf %4, %4 : vector<16x128xf32>
    %7 = arith.addf %5, %6 : vector<16x128xf32>
    %cst_3 = arith.constant dense<0xFF800000> : vector<128xf32>
    %8 = vector.multi_reduction <maximumf>, %7, %cst_3 [0] : vector<16x128xf32> to vector<128xf32>
    %9 = vector.shape_cast %8 : vector<128xf32> to vector<1x128xf32>
    %10 = vector.broadcast %9 : vector<1x128xf32> to vector<16x128xf32>
    %11 = arith.cmpf oge, %7, %10 : vector<16x128xf32>
    %cst_4 = arith.constant 0xFF800000 : f32
    %12 = vector.broadcast %cst_4 : f32 to vector<16x128xf32>
    %13 = arith.select %11, %12, %7 : vector<16x128xi1>, vector<16x128xf32>
    %cst_5 = arith.constant dense<0xFF800000> : vector<128xf32>
    %14 = vector.multi_reduction <maximumf>, %13, %cst_5 [0] : vector<16x128xf32> to vector<128xf32>
    %15 = vector.shape_cast %14 : vector<128xf32> to vector<1x128xf32>
    %16 = vector.broadcast %15 : vector<1x128xf32> to vector<16x128xf32>
    %17 = arith.cmpf oge, %13, %16 : vector<16x128xf32>
    %cst_6 = arith.constant 0xFF800000 : f32
    %18 = vector.broadcast %cst_6 : f32 to vector<16x128xf32>
    %19 = arith.select %17, %18, %13 : vector<16x128xi1>, vector<16x128xf32>
    %cst_7 = arith.constant dense<0xFF800000> : vector<128xf32>
    %20 = vector.multi_reduction <maximumf>, %19, %cst_7 [0] : vector<16x128xf32> to vector<128xf32>
    %21 = vector.shape_cast %20 : vector<128xf32> to vector<1x128xf32>
    %22 = vector.broadcast %21 : vector<1x128xf32> to vector<16x128xf32>
    %23 = arith.cmpf oge, %7, %22 : vector<16x128xf32>
    %24 = arith.extui %23 : vector<16x128xi1> to vector<16x128xi32>
    %25 = arith.sitofp %24 : vector<16x128xi32> to vector<16x128xf32>
    %26 = tpu.concatenate %25, %25 in 0 : vector<16x128xf32>, vector<16x128xf32> -> vector<32x128xf32>
    %27 = arith.mulf %2, %26 : vector<32x128xf32>
    %c0_8 = arith.constant 0 : index
    %c0_9 = arith.constant 0 : index
    %28 = vector.load %arg3[%c0_8, %c0_9] : memref<16x32xf32, #tpu.memory_space<vmem>>, vector<16x32xf32>
    %cst_10 = arith.constant dense<0.000000e+00> : vector<16x128xf32>
    %29 = tpu.matmul %28, %27, %cst_10 {dimension_numbers = #tpu.dot_dimension_numbers<[1], [0], [0], [1], [0, 0, 1, 1], [], []>, precision = #tpu.contract_precision<fp32>} : vector<16x32xf32>, vector<32x128xf32>, vector<16x128xf32> -> vector<16x128xf32>
    %c0_11 = arith.constant 0 : index
    %c0_12 = arith.constant 0 : index
    %30 = vector.load %arg4[%c0_11, %c0_12] : memref<16x128xf32, #tpu.memory_space<vmem>>, vector<16x128xf32>
    tpu.vector_store %arg4[%c0_11, %c0_12], %29 {strides = array<i32>} : memref<16x128xf32, #tpu.memory_space<vmem>>, vector<16x128xf32>,
    return
  }
  func.func @transform_0(%arg0: i32) -> (i32, i32) {
    %c0_i32 = arith.constant 0 : i32
    %c0_i32_0 = arith.constant 0 : i32
    return %c0_i32, %arg0 : i32, i32
  }
  func.func @transform_1(%arg0: i32) -> (i32, i32) {
    %c0_i32 = arith.constant 0 : i32
    %c0_i32_0 = arith.constant 0 : i32
    %c0_i32_1 = arith.constant 0 : i32
    return %c0_i32, %c0_i32_0 : i32, i32
  }
  func.func @transform_2(%arg0: i32) -> (i32, i32) {
    %c0_i32 = arith.constant 0 : i32
    %c0_i32_0 = arith.constant 0 : i32
    %c0_i32_1 = arith.constant 0 : i32
    return %c0_i32, %c0_i32_0 : i32, i32
  }
  func.func @transform_3(%arg0: i32) -> (i32, i32) {
    %c0_i32 = arith.constant 0 : i32
    %c0_i32_0 = arith.constant 0 : i32
    return %c0_i32, %arg0 : i32, i32
  }
}

</mosaic_0001>

<llo_original>
// kernel: tpu_custom_call.1
$region0: #{tpu_custom_call.1}
  #allocation0 [shape = 'u32[]', space=smem, size = 0x4, offset = 0x4, fixed_abs, tag = 'smem constant byte address 0x4 - core index']
  #allocation1 [shape = 'u32[72,128]{1,0:T(1,128)}', space=vmem, size = 0x9000, scoped, tag = 'internal scratch']
  %s0 = inlined_call_operand.vmem [shape: f32[16,128], index: 0, kind: input, shape index: {}]
  %s1 = inlined_call_operand.vmem [shape: f32[32,16], index: 1, kind: input, shape index: {}]
  %s2 = inlined_call_operand.vmem [shape: f32[16,32], index: 2, kind: input, shape index: {}]
  %s3 = inlined_call_operand.hbm [shape: f32[16,128], index: 3, kind: output, shape index: {}]
  %s4 = sld [smem:[#allocation0]]
  $region22: #{tpu_custom_call.1} parent=0
    _
  %s6 = ssub.s32 1, %s4
  %s7 = scalar_select 0, %s6, %s4
  $region1: #{tpu_custom_call.1} parent=0
    #allocation2 [shape = 'u8[8192]{0}', space=vmem, size = 0x2000, scoped, tag = 'output window, operand 0, single buffered']
    #allocation3 [shape = 's32[1]{0}', space=sflag, size = 0x4, scoped, tag = 'scoped memory for tpu_custom_call.1']
    %8 = vsyncpa [#allocation3], 0
    // Predicated region
    $region2: #{tpu_custom_call.1} parent=1 // pred_check
      _
    $region3: #{tpu_custom_call.1} parent=1 // pred_check_branch
      %10 = sbr.rel (0) target = $region5
    $region4: #{tpu_custom_call.1} parent=1 // pred_region
      _
    $region5: #{tpu_custom_call.1} parent=1 // pred_fallthru
      _
    // Predicated region
    $region6: #{tpu_custom_call.1} parent=1 // pred_check
      _
    $region7: #{tpu_custom_call.1} parent=1 // pred_check_branch
      %12 = sbr.rel (0) target = $region9
    $region8: #{tpu_custom_call.1} parent=1 // pred_region
      _
    $region9: #{tpu_custom_call.1} parent=1 // pred_fallthru
      _
    // Predicated region
    $region10: #{tpu_custom_call.1} parent=1 // pred_check
      _
    $region11: #{tpu_custom_call.1} parent=1 // pred_check_branch
      %14 = sbr.rel (0) target = $region13
    $region12: #{tpu_custom_call.1} parent=1 // pred_region
      _
    $region13: #{tpu_custom_call.1} parent=1 // pred_fallthru
      _
    %v15 = vld [vmem:[%s0] sm:$0xff]
    %v16 = vld [vmem:[%s0 + $0x8] sm:$0xff]
    %v17 = vld [vmem:[%s1] sm:$0xff]
    %v18 = vld [vmem:[%s1 + $0x8] sm:$0xff]
    %v19 = vld [vmem:[%s1 + $0x10] sm:$0xff]
    %v20 = vld [vmem:[%s1 + $0x18] sm:$0xff]
    %vm21 = vcmask 130048
    %v23 = vsel %vm21, %v17, 0
    %v26 = vsel %vm21, %v18, 0
    %v29 = vsel %vm21, %v19, 0
    %v32 = vsel %vm21, %v20, 0
    %34 = vmatpush.msra.mxu0 0.0
    %35 = vmatpush.msra.mxu0 0.0
    %36 = vmatpush.msra.mxu0 0.0
    %37 = vmatpush.msra.mxu0 0.0
    %38 = vmatpush.msra.mxu0 0.0
    %39 = vmatpush.msra.mxu0 0.0
    %40 = vmatpush.msra.mxu0 0.0
    %41 = vmatpush.msra.mxu0 0.0
    %42 = vmatpush.msra.mxu0 0.0
    %43 = vmatpush.msra.mxu0 0.0
    %44 = vmatpush.msra.mxu0 0.0
    %45 = vmatpush.msra.mxu0 0.0
    %46 = vmatpush.msra.mxu0 0.0
    %47 = vmatpush.msra.mxu0 0.0
    %v48 = vand.u32 %v16, 4294901760
    %49 = vmatpush.msra.mxu0 %v48
    %v50 = vand.u32 %v15, 4294901760
    %51 = vmatpush.msra.mxu0 %v50
    %v52 = vand.u32 %v23, 4294901760
    %v53 = vsub.f32 %v23, %v52
    %v54 = vand.u32 %v53, 4294901760
    %v55 = vsub.f32 %v53, %v54
    %v56 = vand.u32 %v55, 4294901760
    %57 = vmatmul.f32.gmra.mxu0 %v56
    %v58 = vpop.f32.mrf.mxu0
    %v59 = vadd.f32 0.0, %v58
    %v60 = vand.u32 %v26, 4294901760
    %v61 = vsub.f32 %v26, %v60
    %v62 = vand.u32 %v61, 4294901760
    %v63 = vsub.f32 %v61, %v62
    %v64 = vand.u32 %v63, 4294901760
    %65 = vmatmul.f32.gmra.mxu0 %v64
    %v66 = vpop.f32.mrf.mxu0
    %v67 = vadd.f32 0.0, %v66
    %v68 = vand.u32 %v29, 4294901760
    %v69 = vsub.f32 %v29, %v68
    %v70 = vand.u32 %v69, 4294901760
    %v71 = vsub.f32 %v69, %v70
    %v72 = vand.u32 %v71, 4294901760
    %73 = vmatmul.f32.gmra.mxu0 %v72
    %v74 = vpop.f32.mrf.mxu0
    %v75 = vadd.f32 0.0, %v74
    %v76 = vand.u32 %v32, 4294901760
    %v77 = vsub.f32 %v32, %v76
    %v78 = vand.u32 %v77, 4294901760
    %v79 = vsub.f32 %v77, %v78
    %v80 = vand.u32 %v79, 4294901760
    %81 = vmatmul.f32.gmra.mxu0 %v80
    %v82 = vpop.f32.mrf.mxu0
    %v83 = vadd.f32 0.0, %v82
    %84 = vdwg.mxu0
    %85 = vmatpush.msra.mxu0 0.0
    %86 = vmatpush.msra.mxu0 0.0
    %87 = vmatpush.msra.mxu0 0.0
    %88 = vmatpush.msra.mxu0 0.0
    %89 = vmatpush.msra.mxu0 0.0
    %90 = vmatpush.msra.mxu0 0.0
    %91 = vmatpush.msra.mxu0 0.0
    %92 = vmatpush.msra.mxu0 0.0
    %93 = vmatpush.msra.mxu0 0.0
    %94 = vmatpush.msra.mxu0 0.0
    %95 = vmatpush.msra.mxu0 0.0
    %96 = vmatpush.msra.mxu0 0.0
    %97 = vmatpush.msra.mxu0 0.0
    %98 = vmatpush.msra.mxu0 0.0
    %v99 = vand.u32 %v16, 4294901760
    %v100 = vsub.f32 %v16, %v99
    %v101 = vand.u32 %v100, 4294901760
    %v102 = vsub.f32 %v100, %v101
    %v103 = vand.u32 %v102, 4294901760
    %104 = vmatpush.msra.mxu0 %v103
    %v105 = vand.u32 %v15, 4294901760
    %v106 = vsub.f32 %v15, %v105
    %v107 = vand.u32 %v106, 4294901760
    %v108 = vsub.f32 %v106, %v107
    %v109 = vand.u32 %v108, 4294901760
    %110 = vmatpush.msra.mxu0 %v109
    %v111 = vand.u32 %v23, 4294901760
    %112 = vmatmul.f32.gmra.mxu0 %v111
    %v113 = vpop.f32.mrf.mxu0
    %v114 = vadd.f32 %v59, %v113
    %v115 = vand.u32 %v26, 4294901760
    %116 = vmatmul.f32.gmra.mxu0 %v115
    %v117 = vpop.f32.mrf.mxu0
    %v118 = vadd.f32 %v67, %v117
    %v119 = vand.u32 %v29, 4294901760
    %120 = vmatmul.f32.gmra.mxu0 %v119
    %v121 = vpop.f32.mrf.mxu0
    %v122 = vadd.f32 %v75, %v121
    %v123 = vand.u32 %v32, 4294901760
    %124 = vmatmul.f32.gmra.mxu0 %v123
    %v125 = vpop.f32.mrf.mxu0
    %v126 = vadd.f32 %v83, %v125
    %127 = vdwg.mxu0
    %128 = vmatpush.msra.mxu0 0.0
    %129 = vmatpush.msra.mxu0 0.0
    %130 = vmatpush.msra.mxu0 0.0
    %131 = vmatpush.msra.mxu0 0.0
    %132 = vmatpush.msra.mxu0 0.0
    %133 = vmatpush.msra.mxu0 0.0
    %134 = vmatpush.msra.mxu0 0.0
    %135 = vmatpush.msra.mxu0 0.0
    %136 = vmatpush.msra.mxu0 0.0
    %137 = vmatpush.msra.mxu0 0.0
    %138 = vmatpush.msra.mxu0 0.0
    %139 = vmatpush.msra.mxu0 0.0
    %140 = vmatpush.msra.mxu0 0.0
    %141 = vmatpush.msra.mxu0 0.0
    %v142 = vand.u32 %v16, 4294901760
    %v143 = vsub.f32 %v16, %v142
    %144 = vmatpush.msra.mxu0 %v143
    %v145 = vand.u32 %v15, 4294901760
    %v146 = vsub.f32 %v15, %v145
    %147 = vmatpush.msra.mxu0 %v146
    %v148 = vand.u32 %v23, 4294901760
    %v149 = vsub.f32 %v23, %v148
    %150 = vmatmul.f32.gmra.mxu0 %v149
    %v151 = vpop.f32.mrf.mxu0
    %v152 = vadd.f32 %v114, %v151
    %v153 = vand.u32 %v26, 4294901760
    %v154 = vsub.f32 %v26, %v153
    %155 = vmatmul.f32.gmra.mxu0 %v154
    %v156 = vpop.f32.mrf.mxu0
    %v157 = vadd.f32 %v118, %v156
    %v158 = vand.u32 %v29, 4294901760
    %v159 = vsub.f32 %v29, %v158
    %160 = vmatmul.f32.gmra.mxu0 %v159
    %v161 = vpop.f32.mrf.mxu0
    %v162 = vadd.f32 %v122, %v161
    %v163 = vand.u32 %v32, 4294901760
    %v164 = vsub.f32 %v32, %v163
    %165 = vmatmul.f32.gmra.mxu0 %v164
    %v166 = vpop.f32.mrf.mxu0
    %v167 = vadd.f32 %v126, %v166
    %168 = vdwg.mxu0
    %169 = vmatpush.msra.mxu0 0.0
    %170 = vmatpush.msra.mxu0 0.0
    %171 = vmatpush.msra.mxu0 0.0
    %172 = vmatpush.msra.mxu0 0.0
    %173 = vmatpush.msra.mxu0 0.0
    %174 = vmatpush.msra.mxu0 0.0
    %175 = vmatpush.msra.mxu0 0.0
    %176 = vmatpush.msra.mxu0 0.0
    %177 = vmatpush.msra.mxu0 0.0
    %178 = vmatpush.msra.mxu0 0.0
    %179 = vmatpush.msra.mxu0 0.0
    %180 = vmatpush.msra.mxu0 0.0
    %181 = vmatpush.msra.mxu0 0.0
    %182 = vmatpush.msra.mxu0 0.0
    %v183 = vand.u32 %v16, 4294901760
    %184 = vmatpush.msra.mxu0 %v183
    %v185 = vand.u32 %v15, 4294901760
    %186 = vmatpush.msra.mxu0 %v185
    %v187 = vand.u32 %v23, 4294901760
    %v188 = vsub.f32 %v23, %v187
    %v189 = vand.u32 %v188, 4294901760
    %190 = vmatmul.f32.gmra.mxu0 %v189
    %v191 = vpop.f32.mrf.mxu0
    %v192 = vadd.f32 %v152, %v191
    %v193 = vand.u32 %v26, 4294901760
    %v194 = vsub.f32 %v26, %v193
    %v195 = vand.u32 %v194, 4294901760
    %196 = vmatmul.f32.gmra.mxu0 %v195
    %v197 = vpop.f32.mrf.mxu0
    %v198 = vadd.f32 %v157, %v197
    %v199 = vand.u32 %v29, 4294901760
    %v200 = vsub.f32 %v29, %v199
    %v201 = vand.u32 %v200, 4294901760
    %202 = vmatmul.f32.gmra.mxu0 %v201
    %v203 = vpop.f32.mrf.mxu0
    %v204 = vadd.f32 %v162, %v203
    %v205 = vand.u32 %v32, 4294901760
    %v206 = vsub.f32 %v32, %v205
    %v207 = vand.u32 %v206, 4294901760
    %208 = vmatmul.f32.gmra.mxu0 %v207
    %v209 = vpop.f32.mrf.mxu0
    %v210 = vadd.f32 %v167, %v209
    %211 = vdwg.mxu0
    %212 = vmatpush.msra.mxu0 0.0
    %213 = vmatpush.msra.mxu0 0.0
    %214 = vmatpush.msra.mxu0 0.0
    %215 = vmatpush.msra.mxu0 0.0
    %216 = vmatpush.msra.mxu0 0.0
    %217 = vmatpush.msra.mxu0 0.0
    %218 = vmatpush.msra.mxu0 0.0
    %219 = vmatpush.msra.mxu0 0.0
    %220 = vmatpush.msra.mxu0 0.0
    %221 = vmatpush.msra.mxu0 0.0
    %222 = vmatpush.msra.mxu0 0.0
    %223 = vmatpush.msra.mxu0 0.0
    %224 = vmatpush.msra.mxu0 0.0
    %225 = vmatpush.msra.mxu0 0.0
    %v226 = vand.u32 %v16, 4294901760
    %v227 = vsub.f32 %v16, %v226
    %v228 = vand.u32 %v227, 4294901760
    %229 = vmatpush.msra.mxu0 %v228
    %v230 = vand.u32 %v15, 4294901760
    %v231 = vsub.f32 %v15, %v230
    %v232 = vand.u32 %v231, 4294901760
    %233 = vmatpush.msra.mxu0 %v232
    %v234 = vand.u32 %v23, 4294901760
    %235 = vmatmul.f32.gmra.mxu0 %v234
    %v236 = vpop.f32.mrf.mxu0
    %v237 = vadd.f32 %v192, %v236
    %v238 = vand.u32 %v26, 4294901760
    %239 = vmatmul.f32.gmra.mxu0 %v238
    %v240 = vpop.f32.mrf.mxu0
    %v241 = vadd.f32 %v198, %v240
    %v242 = vand.u32 %v29, 4294901760
    %243 = vmatmul.f32.gmra.mxu0 %v242
    %v244 = vpop.f32.mrf.mxu0
    %v245 = vadd.f32 %v204, %v244
    %v246 = vand.u32 %v32, 4294901760
    %247 = vmatmul.f32.gmra.mxu0 %v246
    %v248 = vpop.f32.mrf.mxu0
    %v249 = vadd.f32 %v210, %v248
    %250 = vdwg.mxu0
    %251 = vmatpush.msra.mxu0 0.0
    %252 = vmatpush.msra.mxu0 0.0
    %253 = vmatpush.msra.mxu0 0.0
    %254 = vmatpush.msra.mxu0 0.0
    %255 = vmatpush.msra.mxu0 0.0
    %256 = vmatpush.msra.mxu0 0.0
    %257 = vmatpush.msra.mxu0 0.0
    %258 = vmatpush.msra.mxu0 0.0
    %259 = vmatpush.msra.mxu0 0.0
    %260 = vmatpush.msra.mxu0 0.0
    %261 = vmatpush.msra.mxu0 0.0
    %262 = vmatpush.msra.mxu0 0.0
    %263 = vmatpush.msra.mxu0 0.0
    %264 = vmatpush.msra.mxu0 0.0
    %v265 = vand.u32 %v16, 4294901760
    %266 = vmatpush.msra.mxu0 %v265
    %v267 = vand.u32 %v15, 4294901760
    %268 = vmatpush.msra.mxu0 %v267
    %v269 = vand.u32 %v23, 4294901760
    %270 = vmatmul.f32.gmra.mxu0 %v269
    %v271 = vpop.f32.mrf.mxu0
    %v272 = vadd.f32 %v237, %v271
    %v273 = vand.u32 %v26, 4294901760
    %274 = vmatmul.f32.gmra.mxu0 %v273
    %v275 = vpop.f32.mrf.mxu0
    %v276 = vadd.f32 %v241, %v275
    %v277 = vand.u32 %v29, 4294901760
    %278 = vmatmul.f32.gmra.mxu0 %v277
    %v279 = vpop.f32.mrf.mxu0
    %v280 = vadd.f32 %v245, %v279
    %v281 = vand.u32 %v32, 4294901760
    %282 = vmatmul.f32.gmra.mxu0 %v281
    %v283 = vpop.f32.mrf.mxu0
    %v284 = vadd.f32 %v249, %v283
    %285 = vdwg.mxu0
    %v286 = vmul.f32 %v272, %v272
    %v287 = vmul.f32 %v276, %v276
    %v288 = vmul.f32 %v280, %v280
    %v289 = vmul.f32 %v284, %v284
    %v290 = vadd.f32 %v286, %v288
    %v291 = vadd.f32 %v287, %v289
    %v292 = vmax.f32 %v290, %v291
    %v293 = vrot.slane %v292, 4
    %v294 = vmax.f32 %v292, %v293
    %v295 = vrot.slane %v294, 2
    %v296 = vmax.f32 %v294, %v295
    %v297 = vrot.slane %v296, 1
    %v298 = vmax.f32 %v296, %v297
    %vm299 = vcmp.ge.f32.partialorder %v290, %v298
    %vm300 = vcmp.ge.f32.partialorder %v291, %v298
    %v301 = vsel %vm299, -inf, %v290
    %v302 = vsel %vm300, -inf, %v291
    %v303 = vmax.f32 %v301, %v302
    %v304 = vrot.slane %v303, 4
    %v305 = vmax.f32 %v303, %v304
    %v306 = vrot.slane %v305, 2
    %v307 = vmax.f32 %v305, %v306
    %v308 = vrot.slane %v307, 1
    %v309 = vmax.f32 %v307, %v308
    %vm310 = vcmp.ge.f32.partialorder %v301, %v309
    %vm311 = vcmp.ge.f32.partialorder %v302, %v309
    %v312 = vsel %vm310, -inf, %v301
    %v313 = vsel %vm311, -inf, %v302
    %v314 = vmax.f32 %v312, %v313
    %v315 = vrot.slane %v314, 4
    %v316 = vmax.f32 %v314, %v315
    %v317 = vrot.slane %v316, 2
    %v318 = vmax.f32 %v316, %v317
    %v319 = vrot.slane %v318, 1
    %v320 = vmax.f32 %v318, %v319
    %vm321 = vcmp.ge.f32.partialorder %v290, %v320
    %vm322 = vcmp.ge.f32.partialorder %v291, %v320
    %v323 = vsel %vm321, 1, 0
    %v324 = vsel %vm322, 1, 0
    %v325 = vcvt.s32.f32 %v323
    %v326 = vcvt.s32.f32 %v324
    %v327 = vmul.f32 %v272, %v325
    %v328 = vmul.f32 %v276, %v326
    %v329 = vmul.f32 %v280, %v325
    %v330 = vmul.f32 %v284, %v326
    %v331 = vld [vmem:[%s2] sm:$0xff]
    %v332 = vld [vmem:[%s2 + $0x8] sm:$0xff]
    %vm333 = vcmask 261120
    %v335 = vsel %vm333, %v331, 0
    %v338 = vsel %vm333, %v332, 0
    %340 = vmatpush.msra.mxu0 0.0
    %341 = vmatpush.msra.mxu0 0.0
    %342 = vmatpush.msra.mxu0 0.0
    %343 = vmatpush.msra.mxu0 0.0
    %344 = vmatpush.msra.mxu0 0.0
    %345 = vmatpush.msra.mxu0 0.0
    %346 = vmatpush.msra.mxu0 0.0
    %347 = vmatpush.msra.mxu0 0.0
    %348 = vmatpush.msra.mxu0 0.0
    %349 = vmatpush.msra.mxu0 0.0
    %350 = vmatpush.msra.mxu0 0.0
    %351 = vmatpush.msra.mxu0 0.0
    %v352 = vand.u32 %v330, 4294901760
    %353 = vmatpush.msra.mxu0 %v352
    %v354 = vand.u32 %v329, 4294901760
    %355 = vmatpush.msra.mxu0 %v354
    %v356 = vand.u32 %v328, 4294901760
    %357 = vmatpush.msra.mxu0 %v356
    %v358 = vand.u32 %v327, 4294901760
    %359 = vmatpush.msra.mxu0 %v358
    %v360 = vand.u32 %v335, 4294901760
    %v361 = vsub.f32 %v335, %v360
    %v362 = vand.u32 %v361, 4294901760
    %v363 = vsub.f32 %v361, %v362
    %v364 = vand.u32 %v363, 4294901760
    %365 = vmatmul.f32.gmra.mxu0 %v364
    %v366 = vpop.f32.mrf.mxu0
    %v367 = vadd.f32 0.0, %v366
    %v368 = vand.u32 %v338, 4294901760
    %v369 = vsub.f32 %v338, %v368
    %v370 = vand.u32 %v369, 4294901760
    %v371 = vsub.f32 %v369, %v370
    %v372 = vand.u32 %v371, 4294901760
    %373 = vmatmul.f32.gmra.mxu0 %v372
    %v374 = vpop.f32.mrf.mxu0
    %v375 = vadd.f32 0.0, %v374
    %376 = vdwg.mxu0
    %377 = vmatpush.msra.mxu0 0.0
    %378 = vmatpush.msra.mxu0 0.0
    %379 = vmatpush.msra.mxu0 0.0
    %380 = vmatpush.msra.mxu0 0.0
    %381 = vmatpush.msra.mxu0 0.0
    %382 = vmatpush.msra.mxu0 0.0
    %383 = vmatpush.msra.mxu0 0.0
    %384 = vmatpush.msra.mxu0 0.0
    %385 = vmatpush.msra.mxu0 0.0
    %386 = vmatpush.msra.mxu0 0.0
    %387 = vmatpush.msra.mxu0 0.0
    %388 = vmatpush.msra.mxu0 0.0
    %v389 = vand.u32 %v330, 4294901760
    %v390 = vsub.f32 %v330, %v389
    %v391 = vand.u32 %v390, 4294901760
    %v392 = vsub.f32 %v390, %v391
    %v393 = vand.u32 %v392, 4294901760
    %394 = vmatpush.msra.mxu0 %v393
    %v395 = vand.u32 %v329, 4294901760
    %v396 = vsub.f32 %v329, %v395
    %v397 = vand.u32 %v396, 4294901760
    %v398 = vsub.f32 %v396, %v397
    %v399 = vand.u32 %v398, 4294901760
    %400 = vmatpush.msra.mxu0 %v399
    %v401 = vand.u32 %v328, 4294901760
    %v402 = vsub.f32 %v328, %v401
    %v403 = vand.u32 %v402, 4294901760
    %v404 = vsub.f32 %v402, %v403
    %v405 = vand.u32 %v404, 4294901760
    %406 = vmatpush.msra.mxu0 %v405
    %v407 = vand.u32 %v327, 4294901760
    %v408 = vsub.f32 %v327, %v407
    %v409 = vand.u32 %v408, 4294901760
    %v410 = vsub.f32 %v408, %v409
    %v411 = vand.u32 %v410, 4294901760
    %412 = vmatpush.msra.mxu0 %v411
    %v413 = vand.u32 %v335, 4294901760
    %414 = vmatmul.f32.gmra.mxu0 %v413
    %v415 = vpop.f32.mrf.mxu0
    %v416 = vadd.f32 %v367, %v415
    %v417 = vand.u32 %v338, 4294901760
    %418 = vmatmul.f32.gmra.mxu0 %v417
    %v419 = vpop.f32.mrf.mxu0
    %v420 = vadd.f32 %v375, %v419
    %421 = vdwg.mxu0
    %422 = vmatpush.msra.mxu0 0.0
    %423 = vmatpush.msra.mxu0 0.0
    %424 = vmatpush.msra.mxu0 0.0
    %425 = vmatpush.msra.mxu0 0.0
    %426 = vmatpush.msra.mxu0 0.0
    %427 = vmatpush.msra.mxu0 0.0
    %428 = vmatpush.msra.mxu0 0.0
    %429 = vmatpush.msra.mxu0 0.0
    %430 = vmatpush.msra.mxu0 0.0
    %431 = vmatpush.msra.mxu0 0.0
    %432 = vmatpush.msra.mxu0 0.0
    %433 = vmatpush.msra.mxu0 0.0
    %v434 = vand.u32 %v330, 4294901760
    %v435 = vsub.f32 %v330, %v434
    %436 = vmatpush.msra.mxu0 %v435
    %v437 = vand.u32 %v329, 4294901760
    %v438 = vsub.f32 %v329, %v437
    %439 = vmatpush.msra.mxu0 %v438
    %v440 = vand.u32 %v328, 4294901760
    %v441 = vsub.f32 %v328, %v440
    %442 = vmatpush.msra.mxu0 %v441
    %v443 = vand.u32 %v327, 4294901760
    %v444 = vsub.f32 %v327, %v443
    %445 = vmatpush.msra.mxu0 %v444
    %v446 = vand.u32 %v335, 4294901760
    %v447 = vsub.f32 %v335, %v446
    %448 = vmatmul.f32.gmra.mxu0 %v447
    %v449 = vpop.f32.mrf.mxu0
    %v450 = vadd.f32 %v416, %v449
    %v451 = vand.u32 %v338, 4294901760
    %v452 = vsub.f32 %v338, %v451
    %453 = vmatmul.f32.gmra.mxu0 %v452
    %v454 = vpop.f32.mrf.mxu0
    %v455 = vadd.f32 %v420, %v454
    %456 = vdwg.mxu0
    %457 = vmatpush.msra.mxu0 0.0
    %458 = vmatpush.msra.mxu0 0.0
    %459 = vmatpush.msra.mxu0 0.0
    %460 = vmatpush.msra.mxu0 0.0
    %461 = vmatpush.msra.mxu0 0.0
    %462 = vmatpush.msra.mxu0 0.0
    %463 = vmatpush.msra.mxu0 0.0
    %464 = vmatpush.msra.mxu0 0.0
    %465 = vmatpush.msra.mxu0 0.0
    %466 = vmatpush.msra.mxu0 0.0
    %467 = vmatpush.msra.mxu0 0.0
    %468 = vmatpush.msra.mxu0 0.0
    %v469 = vand.u32 %v330, 4294901760
    %470 = vmatpush.msra.mxu0 %v469
    %v471 = vand.u32 %v329, 4294901760
    %472 = vmatpush.msra.mxu0 %v471
    %v473 = vand.u32 %v328, 4294901760
    %474 = vmatpush.msra.mxu0 %v473
    %v475 = vand.u32 %v327, 4294901760
    %476 = vmatpush.msra.mxu0 %v475
    %v477 = vand.u32 %v335, 4294901760
    %v478 = vsub.f32 %v335, %v477
    %v479 = vand.u32 %v478, 4294901760
    %480 = vmatmul.f32.gmra.mxu0 %v479
    %v481 = vpop.f32.mrf.mxu0
    %v482 = vadd.f32 %v450, %v481
    %v483 = vand.u32 %v338, 4294901760
    %v484 = vsub.f32 %v338, %v483
    %v485 = vand.u32 %v484, 4294901760
    %486 = vmatmul.f32.gmra.mxu0 %v485
    %v487 = vpop.f32.mrf.mxu0
    %v488 = vadd.f32 %v455, %v487
    %489 = vdwg.mxu0
    %490 = vmatpush.msra.mxu0 0.0
    %491 = vmatpush.msra.mxu0 0.0
    %492 = vmatpush.msra.mxu0 0.0
    %493 = vmatpush.msra.mxu0 0.0
    %494 = vmatpush.msra.mxu0 0.0
    %495 = vmatpush.msra.mxu0 0.0
    %496 = vmatpush.msra.mxu0 0.0
    %497 = vmatpush.msra.mxu0 0.0
    %498 = vmatpush.msra.mxu0 0.0
    %499 = vmatpush.msra.mxu0 0.0
    %500 = vmatpush.msra.mxu0 0.0
    %501 = vmatpush.msra.mxu0 0.0
    %v502 = vand.u32 %v330, 4294901760
    %v503 = vsub.f32 %v330, %v502
    %v504 = vand.u32 %v503, 4294901760
    %505 = vmatpush.msra.mxu0 %v504
    %v506 = vand.u32 %v329, 4294901760
    %v507 = vsub.f32 %v329, %v506
    %v508 = vand.u32 %v507, 4294901760
    %509 = vmatpush.msra.mxu0 %v508
    %v510 = vand.u32 %v328, 4294901760
    %v511 = vsub.f32 %v328, %v510
    %v512 = vand.u32 %v511, 4294901760
    %513 = vmatpush.msra.mxu0 %v512
    %v514 = vand.u32 %v327, 4294901760
    %v515 = vsub.f32 %v327, %v514
    %v516 = vand.u32 %v515, 4294901760
    %517 = vmatpush.msra.mxu0 %v516
    %v518 = vand.u32 %v335, 4294901760
    %519 = vmatmul.f32.gmra.mxu0 %v518
    %v520 = vpop.f32.mrf.mxu0
    %v521 = vadd.f32 %v482, %v520
    %v522 = vand.u32 %v338, 4294901760
    %523 = vmatmul.f32.gmra.mxu0 %v522
    %v524 = vpop.f32.mrf.mxu0
    %v525 = vadd.f32 %v488, %v524
    %526 = vdwg.mxu0
    %527 = vmatpush.msra.mxu0 0.0
    %528 = vmatpush.msra.mxu0 0.0
    %529 = vmatpush.msra.mxu0 0.0
    %530 = vmatpush.msra.mxu0 0.0
    %531 = vmatpush.msra.mxu0 0.0
    %532 = vmatpush.msra.mxu0 0.0
    %533 = vmatpush.msra.mxu0 0.0
    %534 = vmatpush.msra.mxu0 0.0
    %535 = vmatpush.msra.mxu0 0.0
    %536 = vmatpush.msra.mxu0 0.0
    %537 = vmatpush.msra.mxu0 0.0
    %538 = vmatpush.msra.mxu0 0.0
    %v539 = vand.u32 %v330, 4294901760
    %540 = vmatpush.msra.mxu0 %v539
    %v541 = vand.u32 %v329, 4294901760
    %542 = vmatpush.msra.mxu0 %v541
    %v543 = vand.u32 %v328, 4294901760
    %544 = vmatpush.msra.mxu0 %v543
    %v545 = vand.u32 %v327, 4294901760
    %546 = vmatpush.msra.mxu0 %v545
    %v547 = vand.u32 %v335, 4294901760
    %548 = vmatmul.f32.gmra.mxu0 %v547
    %v549 = vpop.f32.mrf.mxu0
    %v550 = vadd.f32 %v521, %v549
    %v551 = vand.u32 %v338, 4294901760
    %552 = vmatmul.f32.gmra.mxu0 %v551
    %v553 = vpop.f32.mrf.mxu0
    %v554 = vadd.f32 %v525, %v553
    %555 = vdwg.mxu0
    %556 = vst [vmem:[#allocation2] sm:$0xff] %v550
    %557 = vst [vmem:[#allocation2 + $0x8] sm:$0xff] %v554
    // Predicated region
    $region14: #{tpu_custom_call.1} parent=1 // pred_check
      _
    $region15: #{tpu_custom_call.1} parent=1 // pred_check_branch
      %559 = sbr.rel (0) target = $region17
    $region16: #{tpu_custom_call.1} parent=1 // pred_region
      %561 = vsyncadd [#allocation3], 0
      %s562 = sshll.u32 [#allocation2], 4
      %s563 = int_to_ptr.vmem [resolvable:$true] %s562
      %s564 = sshll.u32 %s3, 4
      %s565 = int_to_ptr.hbm [resolvable:$true] %s564
      %570 = dma.vmem_to_hbm [thread:$0]  %s563, 256, %s565, [#allocation3], 128, 128, 8
    $region17: #{tpu_custom_call.1} parent=1 // pred_fallthru
      _
    // Predicated region
    $region18: #{tpu_custom_call.1} parent=1 // pred_check
      _
    $region19: #{tpu_custom_call.1} parent=1 // pred_check_branch
      %572 = sbr.rel (0) target = $region21
    $region20: #{tpu_custom_call.1} parent=1 // pred_region
      %574 = dma.done [#allocation3], 256
    $region21: #{tpu_custom_call.1} parent=1 // pred_fallthru
      _
    %575 = vsyncpa [#allocation3], 1

</llo_original>
